<compile_context>
chip_gen: v5e
topology: v5e:2x2
jax: 0.10.0
libtpu: 0.0.40
codegen_flags: <defaults>
</compile_context>

<pallas_src>
import functools

import jax
import jax.numpy as jnp
from jax.experimental import pallas as pl
from jax.experimental.pallas import tpu as pltpu

# ----------------------------- configuration --------------------------------
B = 2                      # batch (CLS-token features)
LARGE_DIM = 64             # feature dim fed to the head
NUM_CLASSES = [1, 1, 1]    # one logit per task (matches the model usage)
LN_EPS = 1e-6              # nn.LayerNorm(large_dim, eps=1e-06)
LANE = 128                 # TPU lane width


def _round_up(n, m):
    return ((n + m - 1) // m) * m


# ------------------------------ Pallas kernel --------------------------------
def _classification_head_kernel(eps, x_ref, g_ref, b_ref, w_ref, fcb_ref, o_ref):
    """Fused LayerNorm(eps) + packed multi-head linear classifier.

    x_ref   : (B, D)        input features
    g_ref   : (1, D)        LayerNorm gamma
    b_ref   : (1, D)        LayerNorm beta
    w_ref   : (D, C_pad)    all fc_i weights packed + zero-padded to 128 lanes
    fcb_ref : (1, C_pad)    all fc_i biases packed + zero-padded
    o_ref   : (B, C_pad)    packed logits (lane-dense store)
    """
    x = x_ref[...].astype(jnp.float32)
    mean = jnp.mean(x, axis=-1, keepdims=True)
    var = jnp.mean(jnp.square(x - mean), axis=-1, keepdims=True)
    feat = (x - mean) * jax.lax.rsqrt(var + eps)
    feat = feat * g_ref[...] + b_ref[...]
    logits = (jnp.dot(feat, w_ref[...], preferred_element_type=jnp.float32)
              + fcb_ref[...])
    o_ref[...] = logits.astype(o_ref.dtype)


# ------------------------------ wrapper --------------------------------------
def pack_head_params(params):
    """Pack the per-task fc weights/biases once (outside jit) into a single
    (D, C_pad) weight, zero-padded so the kernel's output is 128-lane dense."""
    w_packed = jnp.concatenate([fc['w'] for fc in params['fcs']], axis=1)
    b_packed = jnp.concatenate([fc['b'] for fc in params['fcs']], axis=0)
    splits = tuple(fc['w'].shape[1] for fc in params['fcs'])
    d, total = w_packed.shape
    c_pad = _round_up(max(total, LANE), LANE)
    w_pad = jnp.zeros((d, c_pad), w_packed.dtype).at[:, :total].set(w_packed)
    b_pad = jnp.zeros((c_pad,), b_packed.dtype).at[:total].set(b_packed)
    return {'ln_g': params['ln']['g'],
            'ln_b': params['ln']['b'],
            'w': w_pad,
            'b': b_pad,
            'splits': splits}


def classification_head_forward(packed_params, x):
    """x: (B, D) -> list of (B, num_class) logits, fused into one kernel."""
    Bq, D = x.shape
    w = packed_params['w']
    c_pad = w.shape[1]
    kern = functools.partial(_classification_head_kernel, LN_EPS)

    packed_logits = pl.pallas_call(
        kern,
        out_shape=jax.ShapeDtypeStruct((Bq, c_pad), jnp.float32),
        grid=(1,),
        in_specs=[pl.BlockSpec((Bq, D), lambda i: (0, 0)),
                  pl.BlockSpec((1, D), lambda i: (0, 0)),
                  pl.BlockSpec((1, D), lambda i: (0, 0)),
                  pl.BlockSpec((D, c_pad), lambda i: (0, 0)),
                  pl.BlockSpec((1, c_pad), lambda i: (0, 0))],
        out_specs=pl.BlockSpec((Bq, c_pad), lambda i: (0, 0)),
        compiler_params=pltpu.CompilerParams(
            dimension_semantics=("arbitrary",)),
    )(x,
      packed_params['ln_g'].reshape(1, D),
      packed_params['ln_b'].reshape(1, D),
      w,
      packed_params['b'].reshape(1, c_pad))

    # Recover the per-task list with static slices of the packed slab.
    logits = []
    off = 0
    for nc in packed_params['splits']:
        logits.append(packed_logits[:, off:off + nc])
        off += nc
    return logits


# --------------------------- pure-JAX reference -------------------------------
def classification_head_reference(params, x):
    xf = x.astype(jnp.float32)
    mean = jnp.mean(xf, axis=-1, keepdims=True)
    var = jnp.mean(jnp.square(xf - mean), axis=-1, keepdims=True)
    feat = (xf - mean) / jnp.sqrt(var + LN_EPS)
    feat = feat * params['ln']['g'] + params['ln']['b']
    return [feat @ fc['w'] + fc['b'] for fc in params['fcs']]


# ------------------------------ parameter init --------------------------------
def init_params(seed=0):
    key = jax.random.PRNGKey(seed)
    fcs = []
    for nc in NUM_CLASSES:
        key, kw, kb = jax.random.split(key, 3)
        bound = 1.0 / jnp.sqrt(LARGE_DIM)
        fcs.append({
            'w': jax.random.uniform(kw, (LARGE_DIM, nc), jnp.float32, -bound, bound),
            'b': jax.random.uniform(kb, (nc,), jnp.float32, -bound, bound),
        })
    return {
        'ln': {'g': jnp.ones((LARGE_DIM,), jnp.float32),
               'b': jnp.zeros((LARGE_DIM,), jnp.float32)},
        'fcs': fcs,
    }


# ----------------------------------- main -------------------------------------
if __name__ == "__main__":
    key = jax.random.PRNGKey(0)
    x = jax.random.normal(key, (B, LARGE_DIM), jnp.float32)

    params = init_params(seed=0)
    packed = pack_head_params(params)            # packing happens once, outside jit

    fwd = jax.jit(functools.partial(classification_head_forward, packed))
    logits = fwd(x)
    logits = jax.block_until_ready(logits)

    ref = classification_head_reference(params, x)

    assert len(logits) == len(NUM_CLASSES)
    for lg, rf, nc in zip(logits, ref, NUM_CLASSES):
        assert lg.shape == (B, nc)
        assert bool(jnp.all(jnp.isfinite(lg)))
        assert bool(jnp.allclose(lg, rf, atol=1e-5, rtol=1e-5))
    print("KERNEL_OK")
</pallas_src>

<mosaic_0001>
module attributes {stable_mosaic.version = 11 : i64} {
  func.func @_classification_head_kernel(%arg0: i32, %arg1: memref<2x64xf32, #tpu.memory_space<vmem>>, %arg2: memref<1x64xf32, #tpu.memory_space<vmem>>, %arg3: memref<1x64xf32, #tpu.memory_space<vmem>>, %arg4: memref<64x128xf32, #tpu.memory_space<vmem>>, %arg5: memref<1x128xf32, #tpu.memory_space<vmem>>, %arg6: memref<2x128xf32, #tpu.memory_space<vmem>>) attributes {dimension_semantics = [#tpu.dimension_semantics<arbitrary>], iteration_bounds = array<i64: 1>, scalar_prefetch = 0 : i64, scratch_operands = 0 : i64, tpu.core_type = #tpu.core_type<tc>, window_params = [{pipeline_mode = #tpu.pipeline_mode<synchronous>, transform_indices = @transform_0, window_bounds = array<i64: 2, 64>}, {pipeline_mode = #tpu.pipeline_mode<synchronous>, transform_indices = @transform_1, window_bounds = array<i64: 1, 64>}, {pipeline_mode = #tpu.pipeline_mode<synchronous>, transform_indices = @transform_2, window_bounds = array<i64: 1, 64>}, {pipeline_mode = #tpu.pipeline_mode<synchronous>, transform_indices = @transform_3, window_bounds = array<i64: 64, 128>}, {pipeline_mode = #tpu.pipeline_mode<synchronous>, transform_indices = @transform_4, window_bounds = array<i64: 1, 128>}, {pipeline_mode = #tpu.pipeline_mode<synchronous>, transform_indices = @transform_5, window_bounds = array<i64: 2, 128>}]} {
    %c0 = arith.constant 0 : index
    %c0_0 = arith.constant 0 : index
    %0 = vector.load %arg1[%c0, %c0_0] : memref<2x64xf32, #tpu.memory_space<vmem>>, vector<2x64xf32>
    %cst = arith.constant dense<0.000000e+00> : vector<2xf32>
    %1 = vector.multi_reduction <add>, %0, %cst [1] : vector<2x64xf32> to vector<2xf32>
    %2 = vector.shape_cast %1 : vector<2xf32> to vector<2x1xf32>
    %cst_1 = arith.constant 6.400000e+01 : f32
    %3 = vector.broadcast %cst_1 : f32 to vector<2x1xf32>
    %4 = arith.divf %2, %3 : vector<2x1xf32>
    %5 = vector.broadcast %4 : vector<2x1xf32> to vector<2x64xf32>
    %6 = arith.subf %0, %5 : vector<2x64xf32>
    %7 = arith.mulf %6, %6 : vector<2x64xf32>
    %cst_2 = arith.constant dense<0.000000e+00> : vector<2xf32>
    %8 = vector.multi_reduction <add>, %7, %cst_2 [1] : vector<2x64xf32> to vector<2xf32>
    %9 = vector.shape_cast %8 : vector<2xf32> to vector<2x1xf32>
    %cst_3 = arith.constant 6.400000e+01 : f32
    %10 = vector.broadcast %cst_3 : f32 to vector<2x1xf32>
    %11 = arith.divf %9, %10 : vector<2x1xf32>
    %12 = vector.broadcast %4 : vector<2x1xf32> to vector<2x64xf32>
    %13 = arith.subf %0, %12 : vector<2x64xf32>
    %cst_4 = arith.constant 9.99999997E-7 : f32
    %14 = vector.broadcast %cst_4 : f32 to vector<2x1xf32>
    %15 = arith.addf %11, %14 : vector<2x1xf32>
    %16 = math.rsqrt %15 : vector<2x1xf32>
    %17 = vector.broadcast %16 : vector<2x1xf32> to vector<2x64xf32>
    %18 = arith.mulf %13, %17 : vector<2x64xf32>
    %c0_5 = arith.constant 0 : index
    %c0_6 = arith.constant 0 : index
    %19 = vector.load %arg2[%c0_5, %c0_6] : memref<1x64xf32, #tpu.memory_space<vmem>>, vector<1x64xf32>
    %20 = vector.broadcast %19 : vector<1x64xf32> to vector<2x64xf32>
    %21 = arith.mulf %18, %20 : vector<2x64xf32>
    %c0_7 = arith.constant 0 : index
    %c0_8 = arith.constant 0 : index
    %22 = vector.load %arg3[%c0_7, %c0_8] : memref<1x64xf32, #tpu.memory_space<vmem>>, vector<1x64xf32>
    %23 = vector.broadcast %22 : vector<1x64xf32> to vector<2x64xf32>
    %24 = arith.addf %21, %23 : vector<2x64xf32>
    %c0_9 = arith.constant 0 : index
    %c0_10 = arith.constant 0 : index
    %25 = vector.load %arg4[%c0_9, %c0_10] : memref<64x128xf32, #tpu.memory_space<vmem>>, vector<64x128xf32>
    %cst_11 = arith.constant dense<0.000000e+00> : vector<2x128xf32>
    %26 = tpu.matmul %24, %25, %cst_11 {dimension_numbers = #tpu.dot_dimension_numbers<[1], [0], [0], [1], [0, 0, 1, 1], [], []>} : vector<2x64xf32>, vector<64x128xf32>, vector<2x128xf32> -> vector<2x128xf32>
    %c0_12 = arith.constant 0 : index
    %c0_13 = arith.constant 0 : index
    %27 = vector.load %arg5[%c0_12, %c0_13] : memref<1x128xf32, #tpu.memory_space<vmem>>, vector<1x128xf32>
    %28 = vector.broadcast %27 : vector<1x128xf32> to vector<2x128xf32>
    %29 = arith.addf %26, %28 : vector<2x128xf32>
    %c0_14 = arith.constant 0 : index
    %c0_15 = arith.constant 0 : index
    %30 = vector.load %arg6[%c0_14, %c0_15] : memref<2x128xf32, #tpu.memory_space<vmem>>, vector<2x128xf32>
    tpu.vector_store %arg6[%c0_14, %c0_15], %29 {strides = array<i32>} : memref<2x128xf32, #tpu.memory_space<vmem>>, vector<2x128xf32>,
    return
  }
  func.func @transform_0(%arg0: i32) -> (i32, i32) {
    %c0_i32 = arith.constant 0 : i32
    %c0_i32_0 = arith.constant 0 : i32
    %c0_i32_1 = arith.constant 0 : i32
    return %c0_i32, %c0_i32_0 : i32, i32
  }
  func.func @transform_1(%arg0: i32) -> (i32, i32) {
    %c0_i32 = arith.constant 0 : i32
    %c0_i32_0 = arith.constant 0 : i32
    %c0_i32_1 = arith.constant 0 : i32
    return %c0_i32, %c0_i32_0 : i32, i32
  }
  func.func @transform_2(%arg0: i32) -> (i32, i32) {
    %c0_i32 = arith.constant 0 : i32
    %c0_i32_0 = arith.constant 0 : i32
    %c0_i32_1 = arith.constant 0 : i32
    return %c0_i32, %c0_i32_0 : i32, i32
  }
  func.func @transform_3(%arg0: i32) -> (i32, i32) {
    %c0_i32 = arith.constant 0 : i32
    %c0_i32_0 = arith.constant 0 : i32
    %c0_i32_1 = arith.constant 0 : i32
    return %c0_i32, %c0_i32_0 : i32, i32
  }
  func.func @transform_4(%arg0: i32) -> (i32, i32) {
    %c0_i32 = arith.constant 0 : i32
    %c0_i32_0 = arith.constant 0 : i32
    %c0_i32_1 = arith.constant 0 : i32
    return %c0_i32, %c0_i32_0 : i32, i32
  }
  func.func @transform_5(%arg0: i32) -> (i32, i32) {
    %c0_i32 = arith.constant 0 : i32
    %c0_i32_0 = arith.constant 0 : i32
    %c0_i32_1 = arith.constant 0 : i32
    return %c0_i32, %c0_i32_0 : i32, i32
  }
}

</mosaic_0001>

<llo_original>
// kernel: classification_head_forward.1
$region0: #{classification_head_forward.1}
  #allocation0 [shape = 'u32[]', space=smem, size = 0x4, offset = 0x4, fixed_abs, tag = 'smem constant byte address 0x4 - core index']
  #allocation1 [shape = 'u32[72,128]{1,0:T(1,128)}', space=vmem, size = 0x9000, scoped, tag = 'internal scratch']
  %s0 = inlined_call_operand.vmem [shape: f32[2,64], index: 0, kind: input, shape index: {}]
  %s1 = inlined_call_operand.vmem [shape: f32[1,64], index: 1, kind: input, shape index: {}]
  %s2 = inlined_call_operand.vmem [shape: f32[1,64], index: 2, kind: input, shape index: {}]
  %s3 = inlined_call_operand.hbm [shape: f32[64,128], index: 3, kind: input, shape index: {}]
  %s4 = inlined_call_operand.vmem [shape: f32[1,128], index: 4, kind: input, shape index: {}]
  %s5 = inlined_call_operand.vmem [shape: f32[2,128], index: 5, kind: output, shape index: {}]
  %s6 = sld [smem:[#allocation0]]
  $region34: #{classification_head_forward.1} parent=0
    _
  %s8 = ssub.s32 1, %s6
  %s9 = scalar_select 0, %s8, %s6
  $region1: #{classification_head_forward.1} parent=0
    #allocation2 [shape = 'u8[32768]{0}', space=vmem, size = 0x8000, scoped, tag = 'input window, operand 3, single buffered']
    #allocation3 [shape = 's32[1]{0}', space=sflag, size = 0x4, scoped, tag = 'scoped memory for classification_head_forward.1']
    %10 = vsyncpa [#allocation3], 0
    // Predicated region
    $region2: #{classification_head_forward.1} parent=1 // pred_check
      _
    $region3: #{classification_head_forward.1} parent=1 // pred_check_branch
      %12 = sbr.rel (0) target = $region5
    $region4: #{classification_head_forward.1} parent=1 // pred_region
      _
    $region5: #{classification_head_forward.1} parent=1 // pred_fallthru
      _
    // Predicated region
    $region6: #{classification_head_forward.1} parent=1 // pred_check
      _
    $region7: #{classification_head_forward.1} parent=1 // pred_check_branch
      %14 = sbr.rel (0) target = $region9
    $region8: #{classification_head_forward.1} parent=1 // pred_region
      _
    $region9: #{classification_head_forward.1} parent=1 // pred_fallthru
      _
    // Predicated region
    $region10: #{classification_head_forward.1} parent=1 // pred_check
      _
    $region11: #{classification_head_forward.1} parent=1 // pred_check_branch
      %16 = sbr.rel (0) target = $region13
    $region12: #{classification_head_forward.1} parent=1 // pred_region
      _
    $region13: #{classification_head_forward.1} parent=1 // pred_fallthru
      _
    // Predicated region
    $region14: #{classification_head_forward.1} parent=1 // pred_check
      _
    $region15: #{classification_head_forward.1} parent=1 // pred_check_branch
      %18 = sbr.rel (0) target = $region17
    $region16: #{classification_head_forward.1} parent=1 // pred_region
      %20 = vsyncadd [#allocation3], 0
      %s21 = sshll.u32 %s3, 4
      %s22 = int_to_ptr.hbm [resolvable:$true] %s21
      %s23 = sshll.u32 [#allocation2], 4
      %s24 = int_to_ptr.vmem [resolvable:$true] %s23
      %29 = dma.hbm_to_vmem [thread:$0]  %s22, 1024, %s24, [#allocation3], 128, 128, 8
    $region17: #{classification_head_forward.1} parent=1 // pred_fallthru
      _
    // Predicated region
    $region18: #{classification_head_forward.1} parent=1 // pred_check
      _
    $region19: #{classification_head_forward.1} parent=1 // pred_check_branch
      %31 = sbr.rel (0) target = $region21
    $region20: #{classification_head_forward.1} parent=1 // pred_region
      _
    $region21: #{classification_head_forward.1} parent=1 // pred_fallthru
      _
    // Predicated region
    $region22: #{classification_head_forward.1} parent=1 // pred_check
      _
    $region23: #{classification_head_forward.1} parent=1 // pred_check_branch
      %33 = sbr.rel (0) target = $region25
    $region24: #{classification_head_forward.1} parent=1 // pred_region
      %35 = dma.done [#allocation3], 1024
    $region25: #{classification_head_forward.1} parent=1 // pred_fallthru
      _
    %v36 = vld [vmem:[%s0] sm:$0x3]
    %vm37 = vcmask 517120
    %v38 = vsel %vm37, %v36, 0.0
    %39 = vadd.xlane.f32.xlu0 %v38
    %v40 = vpop.xlane.xlu0 %39
    %v41 = vrcp.pop 64.0
    %v42 = vmul.f32 64.0, %v41
    %v43 = vsub.f32 1.0, %v42
    %v44 = vmul.f32 %v41, %v43
    %v45 = vadd.f32 %v41, %v44
    %vm46 = vweird.f32 %v41
    %v47 = vsel %vm46, %v41, %v45
    %v48 = vmul.f32 %v40, %v47
    %v49 = vsub.f32 %v36, %v48
    %v50 = vmul.f32 %v49, %v49
    %v51 = vsel %vm37, %v50, 0.0
    %52 = vadd.xlane.f32.xlu0 %v51
    %v53 = vpop.xlane.xlu0 %52
    %v54 = vmul.f32 %v53, %v47
    %v55 = vadd.f32 %v54, 1e-06
    %v56 = vrsqrt.pop %v55
    %v57 = vmul.f32 %v56, %v55
    %v58 = vmul.f32 %v57, %v56
    %v59 = vmul.f32 0.5, %v58
    %v60 = vsub.f32 1.5, %v59
    %v61 = vmul.f32 %v56, %v60
    %vm62 = vweird.f32 %v55
    %vm63 = vweird.f32 %v56
    %vm64 = vmor %vm62, %vm63
    %v65 = vsel %vm64, %v56, %v61
    %v66 = vmul.f32 %v49, %v65
    %v67 = vld [vmem:[%s1] sm:$0x1]
    %v69 = vperm.slane %v67, 0
    %v71 = vmul.f32 %v66, %v69
    %v72 = vld [vmem:[%s2] sm:$0x1]
    %v74 = vperm.slane %v72, 0
    %v76 = vadd.f32 %v71, %v74
    %v77 = vld [vmem:[#allocation2] sm:$0xff]
    %v78 = vld [vmem:[#allocation2 + $0x8] sm:$0xff]
    %v79 = vld [vmem:[#allocation2 + $0x10] sm:$0xff]
    %v80 = vld [vmem:[#allocation2 + $0x18] sm:$0xff]
    %v81 = vld [vmem:[#allocation2 + $0x20] sm:$0xff]
    %v82 = vld [vmem:[#allocation2 + $0x28] sm:$0xff]
    %v83 = vld [vmem:[#allocation2 + $0x30] sm:$0xff]
    %v84 = vld [vmem:[#allocation2 + $0x38] sm:$0xff]
    %v85 = vld [vmem:[%s4] sm:$0x1]
    %v87 = vperm.slane %v85, 0
    %vm89 = vcmask 523264
    %v91 = vsel %vm89, %v76, 0
    %93 = vmatpush.msra.mxu0 0.0
    %94 = vmatpush.msra.mxu0 0.0
    %95 = vmatpush.msra.mxu0 0.0
    %96 = vmatpush.msra.mxu0 0.0
    %97 = vmatpush.msra.mxu0 0.0
    %98 = vmatpush.msra.mxu0 0.0
    %99 = vmatpush.msra.mxu0 0.0
    %100 = vmatpush.msra.mxu0 0.0
    %101 = vmatpush.msra.mxu0 %v84
    %102 = vmatpush.msra.mxu0 %v83
    %103 = vmatpush.msra.mxu0 %v82
    %104 = vmatpush.msra.mxu0 %v81
    %105 = vmatpush.msra.mxu0 %v80
    %106 = vmatpush.msra.mxu0 %v79
    %107 = vmatpush.msra.mxu0 %v78
    %108 = vmatpush.msra.mxu0 %v77
    %109 = vmatmul.f32.gmra.mxu0 %v91
    %v110 = vpop.f32.mrf.mxu0
    %v111 = vadd.f32 %v87, %v110
    %112 = vdwg.mxu0
    %113 = vst [vmem:[%s5] sm:$0x3] %v111
    // Predicated region
    $region26: #{classification_head_forward.1} parent=1 // pred_check
      _
    $region27: #{classification_head_forward.1} parent=1 // pred_check_branch
      %115 = sbr.rel (0) target = $region29
    $region28: #{classification_head_forward.1} parent=1 // pred_region
      _
    $region29: #{classification_head_forward.1} parent=1 // pred_fallthru
      _
    // Predicated region
    $region30: #{classification_head_forward.1} parent=1 // pred_check
      _
    $region31: #{classification_head_forward.1} parent=1 // pred_check_branch
      %117 = sbr.rel (0) target = $region33
    $region32: #{classification_head_forward.1} parent=1 // pred_region
      _
    $region33: #{classification_head_forward.1} parent=1 // pred_fallthru
      _
    %118 = vsyncpa [#allocation3], 1

</llo_original>
